<compile_context>
chip_gen: v5e
topology: v5e:2x2
jax: 0.10.0
libtpu: 0.0.40
codegen_flags: <defaults>
</compile_context>

<pallas_src>
import math

import jax
import jax.numpy as jnp
import numpy as np
from jax.experimental import pallas as pl
from jax.experimental.pallas import tpu as pltpu

B_TILE = 8  # batch rows per grid step (sublane-aligned)


def mlp_group_softmax_kernel(x_ref, w1_ref, w23_ref, b_ref, perm_ref, o_ref):
    """Fused 3-layer MLP + grouped (16 groups x 4 classes) softmax for B_TILE samples.

    Layouts (all float32, all fully VMEM-resident; weights re-used across grid steps):
      x_ref    : (B_TILE, 16)   'H' one-hot map encodings (rows)
      w1_ref   : (16, 128)      W1^T
      w23_ref  : (128, 256)     [ W2^T | W3_perm zero-padded to 128 lanes ]
      b_ref    : (1, 384)       [ b1 | b2 | b3_perm zero-padded to 128 lanes ]
      perm_ref : (64, 64)       0/1 matrix: class-major lane 16*c+g -> group-major 4*g+c
      o_ref    : (B_TILE, 64)   group-major probabilities; reshape(B,16,4) is free outside

    W3_perm / b3_perm are permuted so layer-3's output is class-major:
      y[:, 16*c + g] == (h2 @ W3^T + b3)[:, 4*g + c]
    which makes the grouped softmax pure element-wise VPU/EUP work on four (B,16)
    lane slices with a numerically safe per-group max.  The final permutation matmul
    restores group-major order exactly (one 1.0 per column), so no wrapper transpose.
    """
    b1 = b_ref[:, 0:128]
    b2 = b_ref[:, 128:256]
    b3 = b_ref[:, 256:384]          # last 64 lanes are zero padding

    w2t = w23_ref[:, 0:128]
    w3t = w23_ref[:, 128:256]       # last 64 columns are zero padding

    x = x_ref[...]                  # (B_TILE, 16)

    # Layer 1: (B,16) @ (16,128) + b1, ReLU
    h1 = jnp.maximum(
        jnp.dot(x, w1_ref[...], preferred_element_type=jnp.float32) + b1, 0.0)
    # Layer 2: (B,128) @ (128,128) + b2, ReLU
    h2 = jnp.maximum(
        jnp.dot(h1, w2t, preferred_element_type=jnp.float32) + b2, 0.0)
    # Layer 3 (class-major, zero-padded to 128 lanes): (B,128) @ (128,128) + b3
    y = jnp.dot(h2, w3t, preferred_element_type=jnp.float32) + b3

    # Grouped softmax: class c lives in lanes [16c : 16c+16]; group g is lane g.
    y0 = y[:, 0:16]
    y1 = y[:, 16:32]
    y2 = y[:, 32:48]
    y3 = y[:, 48:64]
    gm = jnp.maximum(jnp.maximum(y0, y1), jnp.maximum(y2, y3))  # per-group max
    e0 = jnp.exp(y0 - gm)
    e1 = jnp.exp(y1 - gm)
    e2 = jnp.exp(y2 - gm)
    e3 = jnp.exp(y3 - gm)
    inv = 1.0 / (e0 + e1 + e2 + e3)  # exact divide (1e-5 tolerance)

    # Class-major probabilities (B, 64), then exact 0/1 permutation to group-major
    # on the otherwise-idle MXU, and ONE full-block store.
    probs_cm = jnp.concatenate([e0 * inv, e1 * inv, e2 * inv, e3 * inv], axis=1)
    o_ref[...] = jnp.dot(probs_cm, perm_ref[...], preferred_element_type=jnp.float32)


def prepare_params(params):
    """One-time packing (run once at init, NOT per forward call)."""
    w1, b1, w2, b2, w3, b3 = (np.asarray(p, np.float32) for p in params)

    w1t = jnp.asarray(w1.T)                                            # (16, 128)

    # Class-major permutation: column 16*c + g of w3p == W3[4*g + c, :]
    w3p = w3.T.reshape(128, 16, 4).transpose(0, 2, 1).reshape(128, 64)
    w3p = np.concatenate([w3p, np.zeros((128, 64), np.float32)], axis=1)   # pad -> 128
    w23 = jnp.asarray(np.concatenate([w2.T, w3p], axis=1))             # (128, 256)

    b3p = b3.reshape(16, 4).T.reshape(64)
    b3p = np.concatenate([b3p, np.zeros((64,), np.float32)])           # pad -> 128
    b_all = jnp.asarray(np.concatenate([b1, b2, b3p]).reshape(1, 384)) # (1, 384)

    # Exact class-major -> group-major lane permutation (applied on the MXU).
    perm = np.zeros((64, 64), np.float32)
    for c in range(4):
        for g in range(16):
            perm[16 * c + g, 4 * g + c] = 1.0
    perm = jnp.asarray(perm)

    return w1t, w23, b_all, perm


def _forward_batch_impl(x_batch, w1t, w23, b_all, perm):
    """x_batch: (B, 16) float32 map encodings -> (B, 16, 4) action probabilities."""
    B = x_batch.shape[0]
    b_pad = ((B + B_TILE - 1) // B_TILE) * B_TILE
    x = x_batch.astype(jnp.float32)
    if b_pad != B:
        x = jnp.pad(x, ((0, b_pad - B), (0, 0)))
    num_tiles = b_pad // B_TILE

    out = pl.pallas_call(
        mlp_group_softmax_kernel,
        out_shape=jax.ShapeDtypeStruct((b_pad, 64), jnp.float32),
        grid=(num_tiles,),
        in_specs=[
            pl.BlockSpec((B_TILE, 16), lambda i: (i, 0)),   # per-tile activations
            pl.BlockSpec((16, 128), lambda i: (0, 0)),      # weights: constant block
            pl.BlockSpec((128, 256), lambda i: (0, 0)),     #   -> stay VMEM-resident
            pl.BlockSpec((1, 384), lambda i: (0, 0)),
            pl.BlockSpec((64, 64), lambda i: (0, 0)),
        ],
        out_specs=pl.BlockSpec((B_TILE, 64), lambda i: (i, 0)),
        compiler_params=pltpu.CompilerParams(
            dimension_semantics=("parallel",)),             # shards over v7x's 2 TCs
    )(x, w1t, w23, b_all, perm)

    # Group-major (B, 64) -> (B, 16, 4): contiguous reshape only, no transpose.
    return out[:B].reshape(B, 16, 4)


model_forward_batch = jax.jit(_forward_batch_impl)


@jax.jit
def model_forward(x_vec, w1t, w23, b_all, perm):
    """Single-sample forward matching Model.forward: (16,) -> (16, 4)."""
    return _forward_batch_impl(x_vec.reshape(1, 16), w1t, w23, b_all, perm)[0]


def input_process(map_index, map_name_list):
    """Mirror of Model.input_process: 'H' -> 1.0, else 0.0, row-major flatten."""
    map_name = map_name_list[map_index]
    vec = []
    for row in map_name:
        for k in row:
            vec.append(1.0 if k == 'H' else 0.0)
    return jnp.asarray(np.array(vec, dtype=np.float32))


def init_params(key):
    """Deterministic init matching the shapes / uniform bounds of Model.__init__."""
    k1, k2, k3 = jax.random.split(key, 3)
    b16 = 1.0 / math.sqrt(16.0)
    b128 = 1.0 / math.sqrt(128.0)
    w1 = jax.random.uniform(k1, (128, 16), jnp.float32, minval=-b16, maxval=b16)
    b1 = jnp.zeros((128,), jnp.float32)
    w2 = jax.random.uniform(k2, (128, 128), jnp.float32, minval=-b128, maxval=b128)
    b2 = jnp.zeros((128,), jnp.float32)
    w3 = jax.random.uniform(k3, (64, 128), jnp.float32, minval=-b128, maxval=b128)
    b3 = jnp.zeros((64,), jnp.float32)
    return (w1, b1, w2, b2, w3, b3)


def reference_forward(x_vec, params):
    hp = jax.lax.Precision.HIGHEST
    w1, b1, w2, b2, w3, b3 = params
    h1 = jnp.maximum(jnp.dot(x_vec, w1.T, precision=hp) + b1, 0.0)
    h2 = jnp.maximum(jnp.dot(h1, w2.T, precision=hp) + b2, 0.0)
    y = (jnp.dot(h2, w3.T, precision=hp) + b3).reshape(16, 4)
    return jax.nn.softmax(y, axis=1)


if __name__ == "__main__":
    # In-script "map_name_list" (standard 4x4 frozen-lake layout), deterministic.
    map_name_list = [["SFFF", "FHFH", "FFFH", "HFFG"]]
    map_index = 0

    key = jax.random.PRNGKey(0)
    kp, kb = jax.random.split(key)
    params = init_params(kp)
    prepped = prepare_params(params)               # one-time packing

    # --- Single-sample path (exact Model.forward semantics) ---
    x_vec = input_process(map_index, map_name_list)  # (16,)
    out = jax.block_until_ready(model_forward(x_vec, *prepped))
    ref = reference_forward(x_vec, params)
    assert out.shape == (16, 4)
    np.testing.assert_allclose(np.asarray(out), np.asarray(ref), atol=1e-5, rtol=1e-5)
    np.testing.assert_allclose(np.asarray(out).sum(axis=1), np.ones(16), atol=1e-5)

    # --- Batched path: 16 synthetic hole-maps, weights DMA'd once per call ---
    xb = jax.random.bernoulli(kb, 0.25, (16, 16)).astype(jnp.float32)
    outb = jax.block_until_ready(model_forward_batch(xb, *prepped))
    refb = jax.vmap(reference_forward, in_axes=(0, None))(xb, params)
    assert outb.shape == (16, 16, 4)
    np.testing.assert_allclose(np.asarray(outb), np.asarray(refb), atol=1e-5, rtol=1e-5)

    print("KERNEL_OK")
</pallas_src>

<mosaic_0001>
module attributes {stable_mosaic.version = 11 : i64} {
  func.func @mlp_group_softmax_kernel(%arg0: i32, %arg1: memref<8x16xf32, #tpu.memory_space<vmem>>, %arg2: memref<16x128xf32, #tpu.memory_space<vmem>>, %arg3: memref<128x256xf32, #tpu.memory_space<vmem>>, %arg4: memref<1x384xf32, #tpu.memory_space<vmem>>, %arg5: memref<64x64xf32, #tpu.memory_space<vmem>>, %arg6: memref<8x64xf32, #tpu.memory_space<vmem>>) attributes {dimension_semantics = [#tpu.dimension_semantics<parallel>], iteration_bounds = array<i64: 1>, scalar_prefetch = 0 : i64, scratch_operands = 0 : i64, tpu.core_type = #tpu.core_type<tc>, window_params = [{transform_indices = @transform_0, window_bounds = array<i64: 8, 16>}, {pipeline_mode = #tpu.pipeline_mode<synchronous>, transform_indices = @transform_1, window_bounds = array<i64: 16, 128>}, {pipeline_mode = #tpu.pipeline_mode<synchronous>, transform_indices = @transform_2, window_bounds = array<i64: 128, 256>}, {pipeline_mode = #tpu.pipeline_mode<synchronous>, transform_indices = @transform_3, window_bounds = array<i64: 1, 384>}, {pipeline_mode = #tpu.pipeline_mode<synchronous>, transform_indices = @transform_4, window_bounds = array<i64: 64, 64>}, {transform_indices = @transform_5, window_bounds = array<i64: 8, 64>}]} {
    %c0 = arith.constant 0 : index
    %c0_0 = arith.constant 0 : index
    %0 = vector.load %arg4[%c0, %c0_0] : memref<1x384xf32, #tpu.memory_space<vmem>>, vector<1x128xf32>
    %c0_1 = arith.constant 0 : index
    %c128 = arith.constant 128 : index
    %1 = vector.load %arg4[%c0_1, %c128] : memref<1x384xf32, #tpu.memory_space<vmem>>, vector<1x128xf32>
    %c0_2 = arith.constant 0 : index
    %c256 = arith.constant 256 : index
    %2 = vector.load %arg4[%c0_2, %c256] : memref<1x384xf32, #tpu.memory_space<vmem>>, vector<1x128xf32>
    %c0_3 = arith.constant 0 : index
    %c0_4 = arith.constant 0 : index
    %3 = vector.load %arg3[%c0_3, %c0_4] : memref<128x256xf32, #tpu.memory_space<vmem>>, vector<128x128xf32>
    %c0_5 = arith.constant 0 : index
    %c128_6 = arith.constant 128 : index
    %4 = vector.load %arg3[%c0_5, %c128_6] : memref<128x256xf32, #tpu.memory_space<vmem>>, vector<128x128xf32>
    %c0_7 = arith.constant 0 : index
    %c0_8 = arith.constant 0 : index
    %5 = vector.load %arg1[%c0_7, %c0_8] : memref<8x16xf32, #tpu.memory_space<vmem>>, vector<8x16xf32>
    %c0_9 = arith.constant 0 : index
    %c0_10 = arith.constant 0 : index
    %6 = vector.load %arg2[%c0_9, %c0_10] : memref<16x128xf32, #tpu.memory_space<vmem>>, vector<16x128xf32>
    %cst = arith.constant dense<0.000000e+00> : vector<8x128xf32>
    %7 = tpu.matmul %5, %6, %cst {dimension_numbers = #tpu.dot_dimension_numbers<[1], [0], [0], [1], [0, 0, 1, 1], [], []>} : vector<8x16xf32>, vector<16x128xf32>, vector<8x128xf32> -> vector<8x128xf32>
    %8 = vector.broadcast %0 : vector<1x128xf32> to vector<8x128xf32>
    %9 = arith.addf %7, %8 : vector<8x128xf32>
    %cst_11 = arith.constant 0.000000e+00 : f32
    %10 = vector.broadcast %cst_11 : f32 to vector<8x128xf32>
    %11 = arith.maximumf %9, %10 : vector<8x128xf32>
    %cst_12 = arith.constant dense<0.000000e+00> : vector<8x128xf32>
    %12 = tpu.matmul %11, %3, %cst_12 {dimension_numbers = #tpu.dot_dimension_numbers<[1], [0], [0], [1], [0, 0, 1, 1], [], []>} : vector<8x128xf32>, vector<128x128xf32>, vector<8x128xf32> -> vector<8x128xf32>
    %13 = vector.broadcast %1 : vector<1x128xf32> to vector<8x128xf32>
    %14 = arith.addf %12, %13 : vector<8x128xf32>
    %cst_13 = arith.constant 0.000000e+00 : f32
    %15 = vector.broadcast %cst_13 : f32 to vector<8x128xf32>
    %16 = arith.maximumf %14, %15 : vector<8x128xf32>
    %cst_14 = arith.constant dense<0.000000e+00> : vector<8x128xf32>
    %17 = tpu.matmul %16, %4, %cst_14 {dimension_numbers = #tpu.dot_dimension_numbers<[1], [0], [0], [1], [0, 0, 1, 1], [], []>} : vector<8x128xf32>, vector<128x128xf32>, vector<8x128xf32> -> vector<8x128xf32>
    %18 = vector.broadcast %2 : vector<1x128xf32> to vector<8x128xf32>
    %19 = arith.addf %17, %18 : vector<8x128xf32>
    %20 = vector.extract_strided_slice %19 {offsets = [0, 0], sizes = [8, 16], strides = [1, 1]} : vector<8x128xf32> to vector<8x16xf32>
    %21 = vector.extract_strided_slice %19 {offsets = [0, 16], sizes = [8, 16], strides = [1, 1]} : vector<8x128xf32> to vector<8x16xf32>
    %22 = vector.extract_strided_slice %19 {offsets = [0, 32], sizes = [8, 16], strides = [1, 1]} : vector<8x128xf32> to vector<8x16xf32>
    %23 = vector.extract_strided_slice %19 {offsets = [0, 48], sizes = [8, 16], strides = [1, 1]} : vector<8x128xf32> to vector<8x16xf32>
    %24 = arith.maximumf %20, %21 : vector<8x16xf32>
    %25 = arith.maximumf %22, %23 : vector<8x16xf32>
    %26 = arith.maximumf %24, %25 : vector<8x16xf32>
    %27 = arith.subf %20, %26 : vector<8x16xf32>
    %28 = math.exp %27 : vector<8x16xf32>
    %29 = arith.subf %21, %26 : vector<8x16xf32>
    %30 = math.exp %29 : vector<8x16xf32>
    %31 = arith.subf %22, %26 : vector<8x16xf32>
    %32 = math.exp %31 : vector<8x16xf32>
    %33 = arith.subf %23, %26 : vector<8x16xf32>
    %34 = math.exp %33 : vector<8x16xf32>
    %35 = arith.addf %28, %30 : vector<8x16xf32>
    %36 = arith.addf %35, %32 : vector<8x16xf32>
    %37 = arith.addf %36, %34 : vector<8x16xf32>
    %cst_15 = arith.constant 1.000000e+00 : f32
    %38 = vector.broadcast %cst_15 : f32 to vector<8x16xf32>
    %39 = arith.divf %38, %37 : vector<8x16xf32>
    %40 = arith.mulf %28, %39 : vector<8x16xf32>
    %41 = arith.mulf %30, %39 : vector<8x16xf32>
    %42 = arith.mulf %32, %39 : vector<8x16xf32>
    %43 = arith.mulf %34, %39 : vector<8x16xf32>
    %44 = tpu.concatenate %40, %41, %42, %43 in 1 : vector<8x16xf32>, vector<8x16xf32>, vector<8x16xf32>, vector<8x16xf32> -> vector<8x64xf32>
    %c0_16 = arith.constant 0 : index
    %c0_17 = arith.constant 0 : index
    %45 = vector.load %arg5[%c0_16, %c0_17] : memref<64x64xf32, #tpu.memory_space<vmem>>, vector<64x64xf32>
    %cst_18 = arith.constant dense<0.000000e+00> : vector<8x64xf32>
    %46 = tpu.matmul %44, %45, %cst_18 {dimension_numbers = #tpu.dot_dimension_numbers<[1], [0], [0], [1], [0, 0, 1, 1], [], []>} : vector<8x64xf32>, vector<64x64xf32>, vector<8x64xf32> -> vector<8x64xf32>
    %c0_19 = arith.constant 0 : index
    %c0_20 = arith.constant 0 : index
    %47 = vector.load %arg6[%c0_19, %c0_20] : memref<8x64xf32, #tpu.memory_space<vmem>>, vector<8x64xf32>
    tpu.vector_store %arg6[%c0_19, %c0_20], %46 {strides = array<i32>} : memref<8x64xf32, #tpu.memory_space<vmem>>, vector<8x64xf32>,
    return
  }
  func.func @transform_0(%arg0: i32) -> (i32, i32) {
    %c0_i32 = arith.constant 0 : i32
    %c0_i32_0 = arith.constant 0 : i32
    return %arg0, %c0_i32 : i32, i32
  }
  func.func @transform_1(%arg0: i32) -> (i32, i32) {
    %c0_i32 = arith.constant 0 : i32
    %c0_i32_0 = arith.constant 0 : i32
    %c0_i32_1 = arith.constant 0 : i32
    return %c0_i32, %c0_i32_0 : i32, i32
  }
  func.func @transform_2(%arg0: i32) -> (i32, i32) {
    %c0_i32 = arith.constant 0 : i32
    %c0_i32_0 = arith.constant 0 : i32
    %c0_i32_1 = arith.constant 0 : i32
    return %c0_i32, %c0_i32_0 : i32, i32
  }
  func.func @transform_3(%arg0: i32) -> (i32, i32) {
    %c0_i32 = arith.constant 0 : i32
    %c0_i32_0 = arith.constant 0 : i32
    %c0_i32_1 = arith.constant 0 : i32
    return %c0_i32, %c0_i32_0 : i32, i32
  }
  func.func @transform_4(%arg0: i32) -> (i32, i32) {
    %c0_i32 = arith.constant 0 : i32
    %c0_i32_0 = arith.constant 0 : i32
    %c0_i32_1 = arith.constant 0 : i32
    return %c0_i32, %c0_i32_0 : i32, i32
  }
  func.func @transform_5(%arg0: i32) -> (i32, i32) {
    %c0_i32 = arith.constant 0 : i32
    %c0_i32_0 = arith.constant 0 : i32
    return %arg0, %c0_i32 : i32, i32
  }
}

</mosaic_0001>

<llo_original>
// kernel: model_forward.1
$region0: #{model_forward.1}
  #allocation0 [shape = 'u32[]', space=smem, size = 0x4, offset = 0x4, fixed_abs, tag = 'smem constant byte address 0x4 - core index']
  #allocation1 [shape = 'u32[72,128]{1,0:T(1,128)}', space=vmem, size = 0x9000, scoped, tag = 'internal scratch']
  %s0 = inlined_call_operand.vmem [shape: f32[8,16], index: 0, kind: input, shape index: {}]
  %s1 = inlined_call_operand.hbm [shape: f32[16,128], index: 1, kind: input, shape index: {}]
  %s2 = inlined_call_operand.hbm [shape: f32[128,256], index: 2, kind: input, shape index: {}]
  %s3 = inlined_call_operand.vmem [shape: f32[1,384], index: 3, kind: input, shape index: {}]
  %s4 = inlined_call_operand.hbm [shape: f32[64,64], index: 4, kind: input, shape index: {}]
  %s5 = inlined_call_operand.vmem [shape: f32[8,64], index: 5, kind: output, shape index: {}]
  %s6 = sld [smem:[#allocation0]]
  $region42: #{model_forward.1} parent=0
    _
  %s8 = ssub.s32 1, %s6
  %s9 = scalar_select 0, %s8, %s6
  $region1: #{model_forward.1} parent=0
    #allocation2 [shape = 'u8[8192]{0}', space=vmem, size = 0x2000, scoped, tag = 'input window, operand 1, single buffered']
    #allocation3 [shape = 's32[1]{0}', space=sflag, size = 0x4, scoped, tag = 'scoped memory for model_forward.1']
    #allocation4 [shape = 'u8[131072]{0}', space=vmem, size = 0x20000, scoped, tag = 'input window, operand 2, single buffered']
    #allocation5 [shape = 's32[1]{0}', space=sflag, size = 0x4, scoped, tag = 'scoped memory for model_forward.1']
    #allocation6 [shape = 'u8[32768]{0}', space=vmem, size = 0x8000, scoped, tag = 'input window, operand 4, single buffered']
    %10 = vsyncpa [#allocation3], 0
    %11 = vsyncpa [#allocation5], 0
    // Predicated region
    $region2: #{model_forward.1} parent=1 // pred_check
      _
    $region3: #{model_forward.1} parent=1 // pred_check_branch
      %13 = sbr.rel (0) target = $region5
    $region4: #{model_forward.1} parent=1 // pred_region
      _
    $region5: #{model_forward.1} parent=1 // pred_fallthru
      _
    // Predicated region
    $region6: #{model_forward.1} parent=1 // pred_check
      _
    $region7: #{model_forward.1} parent=1 // pred_check_branch
      %15 = sbr.rel (0) target = $region9
    $region8: #{model_forward.1} parent=1 // pred_region
      %17 = vsyncadd [#allocation3], 0
      %s18 = sshll.u32 %s1, 4
      %s19 = int_to_ptr.hbm [resolvable:$true] %s18
      %s20 = sshll.u32 [#allocation2], 4
      %s21 = int_to_ptr.vmem [resolvable:$true] %s20
      %26 = dma.hbm_to_vmem [thread:$0]  %s19, 256, %s21, [#allocation3], 128, 128, 8
    $region9: #{model_forward.1} parent=1 // pred_fallthru
      _
    // Predicated region
    $region10: #{model_forward.1} parent=1 // pred_check
      _
    $region11: #{model_forward.1} parent=1 // pred_check_branch
      %28 = sbr.rel (0) target = $region13
    $region12: #{model_forward.1} parent=1 // pred_region
      %30 = vsyncadd [#allocation5], 0
      %s31 = sshll.u32 %s2, 4
      %s32 = int_to_ptr.hbm [resolvable:$true] %s31
      %s33 = sshll.u32 [#allocation4], 4
      %s34 = int_to_ptr.vmem [resolvable:$true] %s33
      %39 = dma.hbm_to_vmem [thread:$0]  %s32, 4096, %s34, [#allocation5], 256, 256, 16
    $region13: #{model_forward.1} parent=1 // pred_fallthru
      _
    // Predicated region
    $region14: #{model_forward.1} parent=1 // pred_check
      _
    $region15: #{model_forward.1} parent=1 // pred_check_branch
      %41 = sbr.rel (0) target = $region17
    $region16: #{model_forward.1} parent=1 // pred_region
      _
    $region17: #{model_forward.1} parent=1 // pred_fallthru
      _
    // Predicated region
    $region18: #{model_forward.1} parent=1 // pred_check
      _
    $region19: #{model_forward.1} parent=1 // pred_check_branch
      %43 = sbr.rel (0) target = $region21
    $region20: #{model_forward.1} parent=1 // pred_region
      %45 = vsyncadd [#allocation5], 0
      %s46 = sshll.u32 %s4, 4
      %s47 = int_to_ptr.hbm [resolvable:$true] %s46
      %s48 = sshll.u32 [#allocation6], 4
      %s49 = int_to_ptr.vmem [resolvable:$true] %s48
      %54 = dma.hbm_to_vmem [thread:$0]  %s47, 1024, %s49, [#allocation5], 128, 128, 8
    $region21: #{model_forward.1} parent=1 // pred_fallthru
      _
    // Predicated region
    $region22: #{model_forward.1} parent=1 // pred_check
      _
    $region23: #{model_forward.1} parent=1 // pred_check_branch
      %56 = sbr.rel (0) target = $region25
    $region24: #{model_forward.1} parent=1 // pred_region
      %58 = dma.done [#allocation3], 256
    $region25: #{model_forward.1} parent=1 // pred_fallthru
      _
    // Predicated region
    $region26: #{model_forward.1} parent=1 // pred_check
      _
    $region27: #{model_forward.1} parent=1 // pred_check_branch
      %60 = sbr.rel (0) target = $region29
    $region28: #{model_forward.1} parent=1 // pred_region
      %62 = dma.done [#allocation5], 4096
    $region29: #{model_forward.1} parent=1 // pred_fallthru
      _
    // Predicated region
    $region30: #{model_forward.1} parent=1 // pred_check
      _
    $region31: #{model_forward.1} parent=1 // pred_check_branch
      %64 = sbr.rel (0) target = $region33
    $region32: #{model_forward.1} parent=1 // pred_region
      %66 = dma.done [#allocation5], 1024
    $region33: #{model_forward.1} parent=1 // pred_fallthru
      _
    %v67 = vld [vmem:[%s3] sm:$0x1]
    %v68 = vld [vmem:[%s3 + $0x1] sm:$0x1]
    %v69 = vld [vmem:[%s3 + $0x2] sm:$0x1]
    %v70 = vld [vmem:[#allocation4] sm:$0xff]
    %v71 = vld [vmem:[#allocation4 + $0x10] sm:$0xff]
    %v72 = vld [vmem:[#allocation4 + $0x20] sm:$0xff]
    %v73 = vld [vmem:[#allocation4 + $0x30] sm:$0xff]
    %v74 = vld [vmem:[#allocation4 + $0x40] sm:$0xff]
    %v75 = vld [vmem:[#allocation4 + $0x50] sm:$0xff]
    %v76 = vld [vmem:[#allocation4 + $0x60] sm:$0xff]
    %v77 = vld [vmem:[#allocation4 + $0x70] sm:$0xff]
    %v78 = vld [vmem:[#allocation4 + $0x80] sm:$0xff]
    %v79 = vld [vmem:[#allocation4 + $0x90] sm:$0xff]
    %v80 = vld [vmem:[#allocation4 + $0xa0] sm:$0xff]
    %v81 = vld [vmem:[#allocation4 + $0xb0] sm:$0xff]
    %v82 = vld [vmem:[#allocation4 + $0xc0] sm:$0xff]
    %v83 = vld [vmem:[#allocation4 + $0xd0] sm:$0xff]
    %v84 = vld [vmem:[#allocation4 + $0xe0] sm:$0xff]
    %v85 = vld [vmem:[#allocation4 + $0xf0] sm:$0xff]
    %v86 = vld [vmem:[#allocation4 + $0x8] sm:$0xff]
    %v87 = vld [vmem:[#allocation4 + $0x18] sm:$0xff]
    %v88 = vld [vmem:[#allocation4 + $0x28] sm:$0xff]
    %v89 = vld [vmem:[#allocation4 + $0x38] sm:$0xff]
    %v90 = vld [vmem:[#allocation4 + $0x48] sm:$0xff]
    %v91 = vld [vmem:[#allocation4 + $0x58] sm:$0xff]
    %v92 = vld [vmem:[#allocation4 + $0x68] sm:$0xff]
    %v93 = vld [vmem:[#allocation4 + $0x78] sm:$0xff]
    %v94 = vld [vmem:[#allocation4 + $0x88] sm:$0xff]
    %v95 = vld [vmem:[#allocation4 + $0x98] sm:$0xff]
    %v96 = vld [vmem:[#allocation4 + $0xa8] sm:$0xff]
    %v97 = vld [vmem:[#allocation4 + $0xb8] sm:$0xff]
    %v98 = vld [vmem:[#allocation4 + $0xc8] sm:$0xff]
    %v99 = vld [vmem:[#allocation4 + $0xd8] sm:$0xff]
    %v100 = vld [vmem:[#allocation4 + $0xe8] sm:$0xff]
    %v101 = vld [vmem:[#allocation4 + $0xf8] sm:$0xff]
    %v102 = vld [vmem:[%s0] sm:$0xff]
    %v103 = vld [vmem:[#allocation2] sm:$0xff]
    %v104 = vld [vmem:[#allocation2 + $0x8] sm:$0xff]
    %v106 = vperm.slane %v67, 0
    %vm108 = vcmask 130048
    %v110 = vsel %vm108, %v102, 0
    %112 = vmatpush.msra.mxu0 0.0
    %113 = vmatpush.msra.mxu0 0.0
    %114 = vmatpush.msra.mxu0 0.0
    %115 = vmatpush.msra.mxu0 0.0
    %116 = vmatpush.msra.mxu0 0.0
    %117 = vmatpush.msra.mxu0 0.0
    %118 = vmatpush.msra.mxu0 0.0
    %119 = vmatpush.msra.mxu0 0.0
    %120 = vmatpush.msra.mxu0 0.0
    %121 = vmatpush.msra.mxu0 0.0
    %122 = vmatpush.msra.mxu0 0.0
    %123 = vmatpush.msra.mxu0 0.0
    %124 = vmatpush.msra.mxu0 0.0
    %125 = vmatpush.msra.mxu0 0.0
    %126 = vmatpush.msra.mxu0 %v104
    %127 = vmatpush.msra.mxu0 %v103
    %128 = vmatmul.f32.gmra.mxu0 %v110
    %v129 = vpop.f32.mrf.mxu0
    %v130 = vadd.f32 %v106, %v129
    %131 = vdwg.mxu0
    %v132 = vmax.f32 %v130, 0.0
    %v134 = vperm.slane %v68, 0
    %136 = vmatpush.msra.mxu0 %v85
    %137 = vmatpush.msra.mxu0 %v84
    %138 = vmatpush.msra.mxu0 %v83
    %139 = vmatpush.msra.mxu0 %v82
    %140 = vmatpush.msra.mxu0 %v81
    %141 = vmatpush.msra.mxu0 %v80
    %142 = vmatpush.msra.mxu0 %v79
    %143 = vmatpush.msra.mxu0 %v78
    %144 = vmatpush.msra.mxu0 %v77
    %145 = vmatpush.msra.mxu0 %v76
    %146 = vmatpush.msra.mxu0 %v75
    %147 = vmatpush.msra.mxu0 %v74
    %148 = vmatpush.msra.mxu0 %v73
    %149 = vmatpush.msra.mxu0 %v72
    %150 = vmatpush.msra.mxu0 %v71
    %151 = vmatpush.msra.mxu0 %v70
    %152 = vmatmul.f32.gmra.mxu0 %v132
    %v153 = vpop.f32.mrf.mxu0
    %v154 = vadd.f32 %v134, %v153
    %155 = vdwg.mxu0
    %v156 = vmax.f32 %v154, 0.0
    %v158 = vperm.slane %v69, 0
    %160 = vmatpush.msra.mxu0 %v101
    %161 = vmatpush.msra.mxu0 %v100
    %162 = vmatpush.msra.mxu0 %v99
    %163 = vmatpush.msra.mxu0 %v98
    %164 = vmatpush.msra.mxu0 %v97
    %165 = vmatpush.msra.mxu0 %v96
    %166 = vmatpush.msra.mxu0 %v95
    %167 = vmatpush.msra.mxu0 %v94
    %168 = vmatpush.msra.mxu0 %v93
    %169 = vmatpush.msra.mxu0 %v92
    %170 = vmatpush.msra.mxu0 %v91
    %171 = vmatpush.msra.mxu0 %v90
    %172 = vmatpush.msra.mxu0 %v89
    %173 = vmatpush.msra.mxu0 %v88
    %174 = vmatpush.msra.mxu0 %v87
    %175 = vmatpush.msra.mxu0 %v86
    %176 = vmatmul.f32.gmra.mxu0 %v156
    %v177 = vpop.f32.mrf.mxu0
    %v178 = vadd.f32 %v158, %v177
    %179 = vdwg.mxu0
    %181 = vrot.lane.b32.xlu0 %v178, 112
    %v182 = vpop.permute.xlu0 %181
    %v184 = vmax.f32 %v178, %v182
    %186 = vrot.lane.b32.xlu0 %v184, 96
    %v187 = vpop.permute.xlu0 %186
    %v189 = vmax.f32 %v184, %v187
    %v190 = vsub.f32 %v178, %v189
    %v191 = vmul.f32 %v190, 1.442695
    %v192 = vpow.pop %v191
    %194 = vrot.lane.b32.xlu0 %v189, 16
    %v195 = vpop.permute.xlu0 %194
    %v197 = vsub.f32 %v178, %v195
    %v198 = vmul.f32 %v197, 1.442695
    %v199 = vpow.pop %v198
    %200 = vrot.lane.b32.xlu0 %v189, 32
    %v201 = vpop.permute.xlu0 %200
    %v203 = vsub.f32 %v178, %v201
    %v204 = vmul.f32 %v203, 1.442695
    %v205 = vpow.pop %v204
    %206 = vrot.lane.b32.xlu0 %v189, 48
    %v207 = vpop.permute.xlu0 %206
    %v209 = vsub.f32 %v178, %v207
    %v210 = vmul.f32 %v209, 1.442695
    %v211 = vpow.pop %v210
    %213 = vrot.lane.b32.xlu0 %v199, 112
    %v214 = vpop.permute.xlu0 %213
    %v216 = vadd.f32 %v192, %v214
    %218 = vrot.lane.b32.xlu0 %v205, 96
    %v219 = vpop.permute.xlu0 %218
    %v221 = vadd.f32 %v216, %v219
    %223 = vrot.lane.b32.xlu0 %v211, 80
    %v224 = vpop.permute.xlu0 %223
    %v226 = vadd.f32 %v221, %v224
    %v227 = vrcp.pop %v226
    %v228 = vmul.f32 %v226, %v227
    %v229 = vsub.f32 1.0, %v228
    %v230 = vmul.f32 %v227, %v229
    %v231 = vadd.f32 %v227, %v230
    %vm232 = vweird.f32 %v226
    %vm233 = vweird.f32 %v227
    %vm234 = vmor %vm232, %vm233
    %v235 = vsel %vm234, %v227, %v231
    %v236 = vand.u32 2147483647, %v226
    %vm237 = vcmp.eq.f32.partialorder %v236, 8.507059e+37
    %v238 = vand.u32 %v226, 2147483648
    %v239 = vor.u32 1.1754944e-38, %v238
    %v240 = vsel %vm237, %v239, %v235
    %v241 = vmul.f32 1.0, %v240
    %v242 = vmul.f32 %v192, %v241
    %244 = vrot.lane.b32.xlu0 %v241, 16
    %v245 = vpop.permute.xlu0 %244
    %v247 = vmul.f32 %v199, %v245
    %248 = vrot.lane.b32.xlu0 %v241, 32
    %v249 = vpop.permute.xlu0 %248
    %v251 = vmul.f32 %v205, %v249
    %252 = vrot.lane.b32.xlu0 %v241, 48
    %v253 = vpop.permute.xlu0 %252
    %v255 = vmul.f32 %v211, %v253
    %v256 = vsel %vm108, %v242, %v247
    %vm257 = vcmask 261120
    %v258 = vsel %vm257, %v256, %v251
    %vm259 = vcmask 392192
    %v260 = vsel %vm259, %v258, %v255
    %v261 = vld [vmem:[#allocation6] sm:$0xff]
    %v262 = vld [vmem:[#allocation6 + $0x8] sm:$0xff]
    %v263 = vld [vmem:[#allocation6 + $0x10] sm:$0xff]
    %v264 = vld [vmem:[#allocation6 + $0x18] sm:$0xff]
    %v265 = vld [vmem:[#allocation6 + $0x20] sm:$0xff]
    %v266 = vld [vmem:[#allocation6 + $0x28] sm:$0xff]
    %v267 = vld [vmem:[#allocation6 + $0x30] sm:$0xff]
    %v268 = vld [vmem:[#allocation6 + $0x38] sm:$0xff]
    %vm269 = vcmask 523264
    %v271 = vsel %vm269, %v260, 0
    %273 = vmatpush.msra.mxu0 0.0
    %274 = vmatpush.msra.mxu0 0.0
    %275 = vmatpush.msra.mxu0 0.0
    %276 = vmatpush.msra.mxu0 0.0
    %277 = vmatpush.msra.mxu0 0.0
    %278 = vmatpush.msra.mxu0 0.0
    %279 = vmatpush.msra.mxu0 0.0
    %280 = vmatpush.msra.mxu0 0.0
    %281 = vmatpush.msra.mxu0 %v268
    %282 = vmatpush.msra.mxu0 %v267
    %283 = vmatpush.msra.mxu0 %v266
    %284 = vmatpush.msra.mxu0 %v265
    %285 = vmatpush.msra.mxu0 %v264
    %286 = vmatpush.msra.mxu0 %v263
    %287 = vmatpush.msra.mxu0 %v262
    %288 = vmatpush.msra.mxu0 %v261
    %289 = vmatmul.f32.gmra.mxu0 %v271
    %v290 = vpop.f32.mrf.mxu0
    %v291 = vadd.f32 0.0, %v290
    %292 = vdwg.mxu0
    %293 = vst.msk [vmem:[%s5] sm:$0xff] %vm269, %v291
    // Predicated region
    $region34: #{model_forward.1} parent=1 // pred_check
      _
    $region35: #{model_forward.1} parent=1 // pred_check_branch
      %295 = sbr.rel (0) target = $region37
    $region36: #{model_forward.1} parent=1 // pred_region
      _
    $region37: #{model_forward.1} parent=1 // pred_fallthru
      _
    // Predicated region
    $region38: #{model_forward.1} parent=1 // pred_check
      _
    $region39: #{model_forward.1} parent=1 // pred_check_branch
      %297 = sbr.rel (0) target = $region41
    $region40: #{model_forward.1} parent=1 // pred_region
      _
    $region41: #{model_forward.1} parent=1 // pred_fallthru
      _
    %298 = vsyncpa [#allocation3], 1
    %299 = vsyncpa [#allocation5], 1

</llo_original>
